<compile_context>
chip_gen: v7x
topology: tpu7x:2x2x1
jax: 0.10.0
libtpu: 0.0.40
codegen_flags: <defaults>
</compile_context>

<pallas_src>
import functools
import math

import jax
import jax.numpy as jnp
from jax.experimental import pallas as pl
from jax.experimental.pallas import tpu as pltpu

_LANE = 128
_MIB = 1024 * 1024
_TM_FULL_CAP = 1024          # rows threshold for the x-stationary (decode) regime
_X_RESIDENT_CAP = 16 * _MIB  # max bytes (single copy) for a fully VMEM-resident x


@functools.lru_cache(maxsize=1)
def _vmem_cap_bytes():
    """Generation-aware scoped-VMEM budget for this kernel."""
    cap = None
    try:
        cap = getattr(pltpu.get_tpu_info(), "vmem_capacity_bytes", None)
    except Exception:
        cap = None
    if not cap:
        return 48 * _MIB                    # safe default (also fits v7x's 64 MiB)
    if cap >= 100 * _MIB:                   # v5e / v6e: 128 MiB physical VMEM
        return 96 * _MIB
    return min(48 * _MIB, (cap * 3) // 4)   # v7x: 64 MiB physical VMEM


def _linear_bias_kernel(x_ref, w_ref, b_ref, o_ref, *scratch, x_resident, tk):
    """One (tm, tn) output tile; grid axis 2 reduces over K.

    If `scratch` is empty, the (float32) output block itself is the accumulator
    (saves the tm*tn*4 B scratch plus the epilogue cast/copy); otherwise
    scratch[0] is a float32 accumulator and the epilogue casts into o_ref.
    """
    k = pl.program_id(2)
    acc = scratch[0] if scratch else o_ref

    @pl.when(k == 0)
    def _():
        # Fold the bias (pre-cast to f32, VMEM-resident across the reduction)
        # into the accumulator init: no epilogue VPU add pass.
        acc[...] = jnp.broadcast_to(b_ref[...], acc.shape)

    if x_resident:
        # x block is the whole (Mp, Kp) activation; slice the K chunk here.
        ks = pl.multiple_of(k * tk, tk)
        x_blk = x_ref[:, pl.ds(ks, tk)]
    else:
        x_blk = x_ref[...]

    acc[...] += jnp.dot(x_blk, w_ref[...], preferred_element_type=jnp.float32)

    if scratch:
        @pl.when(k == pl.num_programs(2) - 1)
        def _():
            o_ref[...] = acc[...].astype(o_ref.dtype)


def _round_up(v, m):
    return -(-v // m) * m


def _sublane_pack(dtype):
    # Rows per packed sublane group: f32 -> 8, bf16 -> 16, int8/fp8 -> 32.
    return max(8, 32 // jnp.dtype(dtype).itemsize)


def _pad_axis(a, axis, target):
    """Zero-pad `axis` up to `target`; identity (no copy) if already there."""
    if a.shape[axis] == target:
        return a
    widths = [(0, 0)] * a.ndim
    widths[axis] = (0, target - a.shape[axis])
    return jnp.pad(a, widths)


def _pick_block(dim, cap, step=_LANE, prefer=256):
    """Block size for an axis of (padded) length `dim` (a multiple of `step`):
    the whole axis if it fits under `cap`, else the largest multiple of
    `prefer` (falling back to `step`) <= cap that divides `dim` exactly."""
    if dim <= cap:
        return dim
    if prefer is not None:
        t = (cap // prefer) * prefer
        while t >= prefer:
            if dim % t == 0:
                return t
            t -= prefer
    t = (cap // step) * step
    while t >= step:
        if dim % t == 0:
            return t
        t -= step
    return step


def _vmem_need(Mp, Kp, tm, tn, tk, xb, wb, ob, x_resident, use_scratch):
    x_bytes = 2 * (Mp * Kp if x_resident else tm * tk) * xb
    w_bytes = 2 * tk * tn * wb
    o_bytes = 2 * tm * tn * ob
    acc_bytes = tm * tn * 4 if use_scratch else 0
    b_bytes = 2 * tn * 4
    return x_bytes + w_bytes + o_bytes + acc_bytes + b_bytes


@functools.partial(jax.jit, static_argnames=("tm", "tn", "tk"))
def tp_column_linear(x, weight, bias=None, *, tm=None, tn=None, tk=None):
    """out = x @ weight + bias, leading dims of x preserved.

    x:      (..., in_features)
    weight: (in_features, out_features_local)
    bias:   (out_features_local,) or None
    """
    in_features, out_features = weight.shape
    lead_shape = x.shape[:-1]
    x2 = x.reshape(-1, in_features)
    M, K, N = x2.shape[0], in_features, out_features

    if bias is None:
        bias = jnp.zeros((N,), x.dtype)

    # ---- static tile / regime selection (runs at trace time) --------------
    if tk is not None and tk % _LANE:
        raise ValueError("tk must be a multiple of 128")
    if tn is not None and tn % _LANE:
        raise ValueError("tn must be a multiple of 128")

    xb = jnp.dtype(x.dtype).itemsize
    wb = jnp.dtype(weight.dtype).itemsize
    ob = xb
    out_is_f32 = jnp.dtype(x.dtype) == jnp.dtype(jnp.float32)
    use_scratch = not out_is_f32
    pack_m = _sublane_pack(x.dtype)
    vmem_cap = _vmem_cap_bytes()
    big_vmem = vmem_cap >= 96 * _MIB

    Kp = _round_up(K, tk if tk is not None else _LANE)
    Np = _round_up(N, tn if tn is not None else _LANE)

    x_resident = False
    if tm is not None:
        if tm % pack_m:
            raise ValueError(f"tm must be a multiple of {pack_m} for dtype {x.dtype}")
        Mp = _round_up(M, tm)
        small_m = False
    else:
        Mp = _round_up(M, pack_m)
        small_m = Mp <= _TM_FULL_CAP
        if small_m:
            # x-stationary (decode / small batch): single M block -> every
            # weight tile is streamed from HBM exactly once, and x is kept
            # fully VMEM-resident when it fits the budget.
            tm = Mp
            x_resident = 2 * Mp * Kp * xb <= min(2 * _X_RESIDENT_CAP, vmem_cap // 3)
        else:
            Mp = _round_up(M, _LANE)
            tm = _pick_block(Mp, 1024 if big_vmem else 512)

    if tk is None:
        tk_cap = 2048 if (small_m or big_vmem) else 1024
        tk = _pick_block(Kp, tk_cap)
    if tn is None:
        if small_m:
            tn_cap = 2048 if big_vmem else 1024
        else:
            tn_cap = 1024 if big_vmem else 512
        tn = _pick_block(Np, tn_cap)
        # v7x has 2 TensorCores and shards "parallel" grid axes across them; in
        # the single-i-block regime make sure the j axis has >= 2 blocks so one
        # core does not idle (negligible cost on the 1-TC parts).
        if small_m and Np // tn < 2 and Np >= 512 and Np % 256 == 0:
            tn = Np // 2

    # Safety valve: shrink tiles (halving, preserving 128-alignment and exact
    # divisibility) until the double-buffered working set fits the budget.
    def _halvable(t, dim):
        return t >= 256 and t % 256 == 0 and dim % (t // 2) == 0

    while _vmem_need(Mp, Kp, tm, tn, tk, xb, wb, ob, x_resident, use_scratch) > vmem_cap:
        if _halvable(tk, Kp):
            tk //= 2
        elif _halvable(tn, Np):
            tn //= 2
        elif x_resident:
            x_resident = False
        elif (not small_m) and _halvable(tm, Mp):
            tm //= 2
        else:
            break

    # ---- padding (identity / no copy for 128-aligned shapes) --------------
    x_p = _pad_axis(_pad_axis(x2, 0, Mp), 1, Kp)
    # TODO(synk): for ragged K/N, hoist this weight pad to parameter-load time
    # (the shard is static); typical 128-aligned hidden sizes incur no copy.
    w_p = _pad_axis(_pad_axis(weight, 0, Kp), 1, Np)
    b_p = _pad_axis(bias.reshape(1, -1).astype(jnp.float32), 1, Np)

    grid = (Mp // tm, Np // tn, Kp // tk)

    if x_resident:
        x_spec = pl.BlockSpec((Mp, Kp), lambda i, j, k: (0, 0))
    else:
        x_spec = pl.BlockSpec((tm, tk), lambda i, j, k: (i, k))

    need = _vmem_need(Mp, Kp, tm, tn, tk, xb, wb, ob, x_resident, use_scratch)
    vmem_limit = int(min(vmem_cap, max(32 * _MIB, need + need // 4)))

    kernel = functools.partial(_linear_bias_kernel, x_resident=x_resident, tk=tk)
    scratch = (pltpu.VMEM((tm, tn), jnp.float32),) if use_scratch else ()

    out_p = pl.pallas_call(
        kernel,
        out_shape=jax.ShapeDtypeStruct((Mp, Np), x.dtype),
        grid_spec=pltpu.PrefetchScalarGridSpec(
            num_scalar_prefetch=0,
            grid=grid,
            in_specs=[
                x_spec,
                pl.BlockSpec((tk, tn), lambda i, j, k: (k, j)),
                pl.BlockSpec((1, tn), lambda i, j, k: (0, j)),
            ],
            out_specs=pl.BlockSpec((tm, tn), lambda i, j, k: (i, j)),
            scratch_shapes=scratch,
        ),
        compiler_params=pltpu.CompilerParams(
            dimension_semantics=("parallel", "parallel", "arbitrary"),
            vmem_limit_bytes=vmem_limit,
        ),
    )(x_p, w_p, b_p)

    out = out_p[:M, :N]
    return out.reshape(lead_shape + (out_features,))


def init_params(key, in_features, out_features_local, dtype=jnp.float32):
    """Deterministic init mimicking the module's reset_parameters().

    The module stores weight as (in_features, out_features_local) — unlike
    nn.Linear's (out, in).  PyTorch's _calculate_fan_in_and_fan_out uses
    fan_in = tensor.size(1), so for THIS module fan_in = out_features_local,
    and kaiming_uniform_(a=sqrt(5)) gives bound = 1/sqrt(fan_in); the bias
    uses the same fan_in.  (This matches the torch code as written.)
    """
    k_w, k_b = jax.random.split(key)
    fan_in = out_features_local
    bound = 1.0 / math.sqrt(fan_in) if fan_in > 0 else 0.0
    weight = jax.random.uniform(
        k_w, (in_features, out_features_local), dtype, minval=-bound, maxval=bound
    )
    bias = jax.random.uniform(
        k_b, (out_features_local,), dtype, minval=-bound, maxval=bound
    )
    return weight, bias


if __name__ == "__main__":
    # Small shapes: batch=2, seq=8, hidden(in_features)=32,
    # out_features=64 with tp_world_size=2 -> 32 per rank.
    batch, seq = 2, 8
    in_features = 32
    out_features_total = 64
    tp_world_size = 2
    out_features_local = out_features_total // tp_world_size

    key = jax.random.PRNGKey(0)
    k_x, k_p, k_x2, k_p2 = jax.random.split(key, 4)
    x = jax.random.normal(k_x, (batch, seq, in_features), dtype=jnp.float32)
    weight, bias = init_params(k_p, in_features, out_features_local)

    # f32, x-stationary / x-resident path with output-resident f32 accumulator.
    out = jax.block_until_ready(tp_column_linear(x, weight, bias))
    ref = (x.reshape(-1, in_features) @ weight + bias).reshape(
        batch, seq, out_features_local
    )
    assert out.shape == (batch, seq, out_features_local)
    assert out.dtype == x.dtype
    assert jnp.allclose(out, ref, atol=1e-5, rtol=1e-5)

    # Explicit tiles: exercises the multi-block (i, j, k) tiled-x reduction path.
    M2, K2, N2 = 256, 256, 256
    x2 = jax.random.normal(k_x2, (2, M2 // 2, K2), dtype=jnp.float32)
    w2, b2 = init_params(k_p2, K2, N2)
    out2 = jax.block_until_ready(
        tp_column_linear(x2, w2, b2, tm=128, tn=128, tk=128)
    )
    ref2 = (x2.reshape(-1, K2) @ w2 + b2).reshape(2, M2 // 2, N2)
    assert jnp.allclose(out2, ref2, atol=1e-3, rtol=1e-3)

    # bf16 fast path (bf16 MXU inputs, f32 scratch accumulation, bf16 output).
    xb16 = x.astype(jnp.bfloat16)
    wb16 = weight.astype(jnp.bfloat16)
    bb16 = bias.astype(jnp.bfloat16)
    outb = jax.block_until_ready(tp_column_linear(xb16, wb16, bb16))
    refb = (
        xb16.astype(jnp.float32).reshape(-1, in_features)
        @ wb16.astype(jnp.float32)
        + bb16.astype(jnp.float32)
    ).reshape(batch, seq, out_features_local)
    assert outb.dtype == jnp.bfloat16
    assert jnp.allclose(outb.astype(jnp.float32), refb, atol=2e-2, rtol=2e-2)

    # TODO(synk): torch.distributed ProcessGroup plumbing is modeled by simply
    # passing the per-rank weight shard; the forward has no collective.
    print("KERNEL_OK")
</pallas_src>

<mosaic_0001>
module attributes {stable_mosaic.version = 11 : i64} {
  func.func @_linear_bias_kernel(%arg0: i32, %arg1: i32, %arg2: i32, %arg3: memref<16x128xf32, #tpu.memory_space<vmem>>, %arg4: memref<128x128xf32, #tpu.memory_space<vmem>>, %arg5: memref<1x128xf32, #tpu.memory_space<vmem>>, %arg6: memref<16x128xf32, #tpu.memory_space<vmem>>) attributes {dimension_semantics = [#tpu.dimension_semantics<parallel>, #tpu.dimension_semantics<parallel>, #tpu.dimension_semantics<arbitrary>], iteration_bounds = array<i64: 1, 1, 1>, scalar_prefetch = 0 : i64, scratch_operands = 0 : i64, tpu.core_type = #tpu.core_type<tc>, window_params = [{pipeline_mode = #tpu.pipeline_mode<synchronous>, transform_indices = @transform_0, window_bounds = array<i64: 16, 128>}, {transform_indices = @transform_1, window_bounds = array<i64: 128, 128>}, {transform_indices = @transform_2, window_bounds = array<i64: 1, 128>}, {transform_indices = @transform_3, window_bounds = array<i64: 16, 128>}]} {
    %c0_i32 = arith.constant 0 : i32
    %0 = arith.cmpi eq, %arg2, %c0_i32 : i32
    %1 = arith.extui %0 : i1 to i32
    %c0_i32_0 = arith.constant 0 : i32
    %2 = arith.cmpi ne, %1, %c0_i32_0 : i32
    scf.if %2 {
      %c0_7 = arith.constant 0 : index
      %c0_8 = arith.constant 0 : index
      %12 = vector.load %arg5[%c0_7, %c0_8] : memref<1x128xf32, #tpu.memory_space<vmem>>, vector<1x128xf32>
      %13 = vector.shape_cast %12 : vector<1x128xf32> to vector<1x128xf32>
      %14 = vector.broadcast %13 : vector<1x128xf32> to vector<16x128xf32>
      %c0_9 = arith.constant 0 : index
      %c0_10 = arith.constant 0 : index
      %15 = vector.load %arg6[%c0_9, %c0_10] : memref<16x128xf32, #tpu.memory_space<vmem>>, vector<16x128xf32>
      tpu.vector_store %arg6[%c0_9, %c0_10], %14 {strides = array<i32>} : memref<16x128xf32, #tpu.memory_space<vmem>>, vector<16x128xf32>,
    } else {
    }
    %c128_i32 = arith.constant 128 : i32
    %3 = arith.muli %arg2, %c128_i32 : i32
    %4 = tpu.assume_multiple %3, 128 : i32
    %c0 = arith.constant 0 : index
    %5 = arith.index_cast %4 : i32 to index
    %6 = vector.load %arg3[%c0, %5] : memref<16x128xf32, #tpu.memory_space<vmem>>, vector<16x128xf32>
    %c0_1 = arith.constant 0 : index
    %c0_2 = arith.constant 0 : index
    %7 = vector.load %arg6[%c0_1, %c0_2] : memref<16x128xf32, #tpu.memory_space<vmem>>, vector<16x128xf32>
    %c0_3 = arith.constant 0 : index
    %c0_4 = arith.constant 0 : index
    %8 = vector.load %arg4[%c0_3, %c0_4] : memref<128x128xf32, #tpu.memory_space<vmem>>, vector<128x128xf32>
    %cst = arith.constant dense<0.000000e+00> : vector<16x128xf32>
    %9 = tpu.matmul %6, %8, %cst {dimension_numbers = #tpu.dot_dimension_numbers<[1], [0], [0], [1], [0, 0, 1, 1], [], []>} : vector<16x128xf32>, vector<128x128xf32>, vector<16x128xf32> -> vector<16x128xf32>
    %10 = arith.addf %7, %9 : vector<16x128xf32>
    %c0_5 = arith.constant 0 : index
    %c0_6 = arith.constant 0 : index
    %11 = vector.load %arg6[%c0_5, %c0_6] : memref<16x128xf32, #tpu.memory_space<vmem>>, vector<16x128xf32>
    tpu.vector_store %arg6[%c0_5, %c0_6], %10 {strides = array<i32>} : memref<16x128xf32, #tpu.memory_space<vmem>>, vector<16x128xf32>,
    return
  }
  func.func @transform_0(%arg0: i32, %arg1: i32, %arg2: i32) -> (i32, i32) {
    %c0_i32 = arith.constant 0 : i32
    %c0_i32_0 = arith.constant 0 : i32
    %c0_i32_1 = arith.constant 0 : i32
    return %c0_i32, %c0_i32_0 : i32, i32
  }
  func.func @transform_1(%arg0: i32, %arg1: i32, %arg2: i32) -> (i32, i32) {
    %c0_i32 = arith.constant 0 : i32
    return %arg2, %arg1 : i32, i32
  }
  func.func @transform_2(%arg0: i32, %arg1: i32, %arg2: i32) -> (i32, i32) {
    %c0_i32 = arith.constant 0 : i32
    %c0_i32_0 = arith.constant 0 : i32
    return %c0_i32, %arg1 : i32, i32
  }
  func.func @transform_3(%arg0: i32, %arg1: i32, %arg2: i32) -> (i32, i32) {
    %c0_i32 = arith.constant 0 : i32
    return %arg0, %arg1 : i32, i32
  }
}

</mosaic_0001>

<llo_original>
// kernel: tp_column_linear.1
$region0: #{tp_column_linear.1}
  #allocation0 [shape = 'u32[]', space=smem, size = 0x4, offset = 0x4, fixed_abs, tag = 'smem constant byte address 0x4 - core index']
  #allocation1 [shape = 'u32[144,128]{1,0:T(1,128)}', space=vmem, size = 0x12000, scoped, tag = 'internal scratch']
  %s0 = inlined_call_operand.vmem [shape: f32[16,128], index: 0, kind: input, shape index: {}]
  %s1 = inlined_call_operand.vmem [shape: f32[128,128], index: 1, kind: input, shape index: {}]
  %s2 = inlined_call_operand.vmem [shape: f32[1,128], index: 2, kind: input, shape index: {}]
  %s3 = inlined_call_operand.vmem [shape: f32[16,128], index: 3, kind: output, shape index: {}]
  %s4 = sld [smem:[#allocation0]]
  $region26: #{tp_column_linear.1} parent=0
    _
  %s6 = ssub.s32 1, %s4
  %s7 = scalar_select 0, %s6, %s4
  // Predicated region
  $region2: #{tp_column_linear.1} parent=0 // pred_check
    _
  $region3: #{tp_column_linear.1} parent=0 // pred_check_branch
    %9 = sbr.rel (0) target = $region5
  $region4: #{tp_column_linear.1} parent=0 // pred_region
    _
  $region5: #{tp_column_linear.1} parent=0 // pred_fallthru
    _
  // Predicated region
  $region6: #{tp_column_linear.1} parent=0 // pred_check
    _
  $region7: #{tp_column_linear.1} parent=0 // pred_check_branch
    %11 = sbr.rel (0) target = $region9
  $region8: #{tp_column_linear.1} parent=0 // pred_region
    _
  $region9: #{tp_column_linear.1} parent=0 // pred_fallthru
    _
  // Predicated region
  $region10: #{tp_column_linear.1} parent=0 // pred_check
    _
  $region11: #{tp_column_linear.1} parent=0 // pred_check_branch
    %13 = sbr.rel (0) target = $region13
  $region12: #{tp_column_linear.1} parent=0 // pred_region
    _
  $region13: #{tp_column_linear.1} parent=0 // pred_fallthru
    _
  %p14 = scmp.eq.s32.totalorder 0, 0
  // Predicated region
  $region14: #{tp_column_linear.1} parent=0 // pred_check
    %p15 = pneg %p14
  $region15: #{tp_column_linear.1} parent=0 // pred_check_branch
    %17 = sbr.rel (%p15) target = $region17
  $region16: #{tp_column_linear.1} parent=0 // pred_region
    %v18 = vld [vmem:[%s2] sm:$0x1]
    %v20 = vlaneseq
    %v21 = vshrl.u32 %v20, 7
    %v22 = vsub.s32 0, %v21
    %v23 = vrot.slane %v18, %v22
    %25 = vst [vmem:[%s3] sm:$0xff] %v23
    %26 = vst [vmem:[%s3 + $0x8] sm:$0xff] %v23
  $region17: #{tp_column_linear.1} parent=0 // pred_fallthru
    _
  %s27 = smul.u32 0, 128
  %s28 = sshra.s32 %s27, 7
  %s29 = sand.u32 %s27, 127
  %s30 = scalar_lea.vmem %s0, %s28
  %v31 = vld [vmem:[%s30] sm:$0xff]
  %v32 = vld [vmem:[%s30 + $0x8] sm:$0xff]
  %v33 = vld [vmem:[%s3] sm:$0xff]
  %v34 = vld [vmem:[%s3 + $0x8] sm:$0xff]
  %v35 = vld [vmem:[%s1] sm:$0xff]
  %v36 = vld [vmem:[%s1 + $0x8] sm:$0xff]
  %v37 = vld [vmem:[%s1 + $0x10] sm:$0xff]
  %v38 = vld [vmem:[%s1 + $0x18] sm:$0xff]
  %v39 = vld [vmem:[%s1 + $0x20] sm:$0xff]
  %v40 = vld [vmem:[%s1 + $0x28] sm:$0xff]
  %v41 = vld [vmem:[%s1 + $0x30] sm:$0xff]
  %v42 = vld [vmem:[%s1 + $0x38] sm:$0xff]
  %v43 = vld [vmem:[%s1 + $0x40] sm:$0xff]
  %v44 = vld [vmem:[%s1 + $0x48] sm:$0xff]
  %v45 = vld [vmem:[%s1 + $0x50] sm:$0xff]
  %v46 = vld [vmem:[%s1 + $0x58] sm:$0xff]
  %v47 = vld [vmem:[%s1 + $0x60] sm:$0xff]
  %v48 = vld [vmem:[%s1 + $0x68] sm:$0xff]
  %v49 = vld [vmem:[%s1 + $0x70] sm:$0xff]
  %v50 = vld [vmem:[%s1 + $0x78] sm:$0xff]
  %51 = vmatprep.subr.mxu0 0.0
  %52 = vmatpush1.msra.mxu0 %v35
  %53 = vmatprep.subr.mxu0 0.0
  %54 = vmatpush1.msra.mxu0 %v36
  %55 = vmatprep.subr.mxu0 0.0
  %56 = vmatpush1.msra.mxu0 %v37
  %57 = vmatprep.subr.mxu0 0.0
  %58 = vmatpush1.msra.mxu0 %v38
  %59 = vmatprep.subr.mxu0 0.0
  %60 = vmatpush1.msra.mxu0 %v39
  %61 = vmatprep.subr.mxu0 0.0
  %62 = vmatpush1.msra.mxu0 %v40
  %63 = vmatprep.subr.mxu0 0.0
  %64 = vmatpush1.msra.mxu0 %v41
  %65 = vmatprep.subr.mxu0 0.0
  %66 = vmatpush1.msra.mxu0 %v42
  %67 = vmatprep.subr.mxu0 0.0
  %68 = vmatpush1.msra.mxu0 %v43
  %69 = vmatprep.subr.mxu0 0.0
  %70 = vmatpush1.msra.mxu0 %v44
  %71 = vmatprep.subr.mxu0 0.0
  %72 = vmatpush1.msra.mxu0 %v45
  %73 = vmatprep.subr.mxu0 0.0
  %74 = vmatpush1.msra.mxu0 %v46
  %75 = vmatprep.subr.mxu0 0.0
  %76 = vmatpush1.msra.mxu0 %v47
  %77 = vmatprep.subr.mxu0 0.0
  %78 = vmatpush1.msra.mxu0 %v48
  %79 = vmatprep.subr.mxu0 0.0
  %80 = vmatpush1.msra.mxu0 %v49
  %81 = vmatprep.subr.mxu0 0.0
  %82 = vmatpush1.msra.mxu0 %v50
  %83 = vmatprep.subr.mxu0 0.0
  %84 = vmatpush1.msra.mxu0 0.0
  %85 = vmatprep.subr.mxu0 0.0
  %86 = vmatpush1.msra.mxu0 0.0
  %87 = vmatprep.subr.mxu0 0.0
  %88 = vmatpush1.msra.mxu0 0.0
  %89 = vmatprep.subr.mxu0 0.0
  %90 = vmatpush1.msra.mxu0 0.0
  %91 = vmatprep.subr.mxu0 0.0
  %92 = vmatpush1.msra.mxu0 0.0
  %93 = vmatprep.subr.mxu0 0.0
  %94 = vmatpush1.msra.mxu0 0.0
  %95 = vmatprep.subr.mxu0 0.0
  %96 = vmatpush1.msra.mxu0 0.0
  %97 = vmatprep.subr.mxu0 0.0
  %98 = vmatpush1.msra.mxu0 0.0
  %99 = vmatprep.subr.mxu0 0.0
  %100 = vmatpush1.msra.mxu0 0.0
  %101 = vmatprep.subr.mxu0 0.0
  %102 = vmatpush1.msra.mxu0 0.0
  %103 = vmatprep.subr.mxu0 0.0
  %104 = vmatpush1.msra.mxu0 0.0
  %105 = vmatprep.subr.mxu0 0.0
  %106 = vmatpush1.msra.mxu0 0.0
  %107 = vmatprep.subr.mxu0 0.0
  %108 = vmatpush1.msra.mxu0 0.0
  %109 = vmatprep.subr.mxu0 0.0
  %110 = vmatpush1.msra.mxu0 0.0
  %111 = vmatprep.subr.mxu0 0.0
  %112 = vmatpush1.msra.mxu0 0.0
  %113 = vmatprep.subr.mxu0 0.0
  %114 = vmatpush1.msra.mxu0 0.0
  %115 = vmatprep.mubr.f32.mxu0 0.0
  %116 = vmatmul.mubr.f32.gmra.mrb[0].mxu0 %v31
  %v117 = vpop.f32.mrb[0].mxu0
  %v118 = vadd.f32 0.0, %v117
  %v119 = vpop.f32.mrb[0].mxu0
  %120 = vmatprep.mubr.f32.mxu0 0.0
  %121 = vmatmul.mubr.f32.gmra.mrb[0].mxu0 %v32
  %v122 = vpop.f32.mrb[0].mxu0
  %v123 = vadd.f32 0.0, %v122
  %v124 = vpop.f32.mrb[0].mxu0
  %125 = vdwg.mxu0
  %v126 = vadd.f32 %v33, %v118
  %v127 = vadd.f32 %v34, %v123
  %128 = vst [vmem:[%s3] sm:$0xff] %v126
  %129 = vst [vmem:[%s3 + $0x8] sm:$0xff] %v127
  // Predicated region
  $region18: #{tp_column_linear.1} parent=0 // pred_check
    _
  $region19: #{tp_column_linear.1} parent=0 // pred_check_branch
    %131 = sbr.rel (0) target = $region21
  $region20: #{tp_column_linear.1} parent=0 // pred_region
    _
  $region21: #{tp_column_linear.1} parent=0 // pred_fallthru
    _
  // Predicated region
  $region22: #{tp_column_linear.1} parent=0 // pred_check
    _
  $region23: #{tp_column_linear.1} parent=0 // pred_check_branch
    %133 = sbr.rel (0) target = $region25
  $region24: #{tp_column_linear.1} parent=0 // pred_region
    _
  $region25: #{tp_column_linear.1} parent=0 // pred_fallthru
    _

</llo_original>
